<compile_context>
chip_gen: v6e
topology: v6e:2x2x1
jax: 0.10.0
libtpu: 0.0.40
codegen_flags: <defaults>
</compile_context>

<pallas_src>
import jax
import jax.numpy as jnp
from jax.experimental import pallas as pl
from jax.experimental.pallas import tpu as pltpu

_LANE = 128


def _sublane_multiple(dtype):
    # f32 -> 8 ; bf16/f16 -> 16 ; int8/fp8 -> 32 (sub-32-bit packs along sublanes).
    itemsize = jnp.dtype(dtype).itemsize
    return max(8, 32 // itemsize)


def _round_up(x, m):
    return ((x + m - 1) // m) * m


# -------------------------------- kernel -----------------------------------

def _gate_select_kernel(alpha_ref, x1_ref, x2_ref, out_ref):
    # alpha_ref: (1,) f32 scalar in SMEM (sigmoid already applied in wrapper).
    alpha = alpha_ref[0]
    x1 = x1_ref[...].astype(jnp.float32)   # upcast in-vreg (v5e has no bf16 VPU)
    x2 = x2_ref[...].astype(jnp.float32)
    out_ref[...] = (alpha * x1 + (1.0 - alpha) * x2).astype(out_ref.dtype)


def _blend_jnp(x1, x2, alpha, out_dtype):
    y = alpha * x1.astype(jnp.float32) + (1.0 - alpha) * x2.astype(jnp.float32)
    return y.astype(out_dtype)


# ------------------------------ JAX wrapper ---------------------------------

def gate_select(x1, x2, gate_weight, *, block_rows=4096, jnp_fallback_elems=1024):
    """GateSelect.forward(x1, x2) with a learned scalar gate.

    x1, x2: same arbitrary shape (element-wise compatible).
    gate_weight: scalar (the nn.Parameter); sigmoid is applied here.
    """
    assert x1.shape == x2.shape, "GateSelect expects element-wise compatible inputs"
    orig_shape = x1.shape
    out_dtype = jnp.result_type(x1.dtype, x2.dtype)
    n = x1.size

    alpha = jax.nn.sigmoid(jnp.asarray(gate_weight, jnp.float32))

    sub = _sublane_multiple(out_dtype)
    tile_elems = sub * _LANE
    n_main = (n // tile_elems) * tile_elems          # tile-aligned prefix

    # Tiny / sub-tile inputs: pallas_call launch cost dominates -> fused XLA op.
    # (Raise jnp_fallback_elems to ~64K elements in production if desired.)
    if n < jnp_fallback_elems or n_main == 0:
        return _blend_jnp(x1, x2, alpha, out_dtype).reshape(orig_shape)

    a = jnp.ravel(x1).astype(out_dtype)              # no-op cast when already native
    b = jnp.ravel(x2).astype(out_dtype)

    rows = n_main // _LANE                           # multiple of `sub` by construction

    # Largest tile <= block_rows, multiple of the dtype sublane packing, but
    # capped so the grid has >= 4 steps (lets "parallel" shard across both
    # TensorCores on v7x).  Partial last block is handled by the cdiv grid.
    br = min(block_rows, rows)
    if rows > 4 * sub:
        br = min(br, _round_up(pl.cdiv(rows, 4), sub))
    br = max(_round_up(br, sub), sub)
    grid = (pl.cdiv(rows, br),)

    out_main = pl.pallas_call(
        _gate_select_kernel,
        out_shape=jax.ShapeDtypeStruct((rows, _LANE), out_dtype),
        grid_spec=pl.GridSpec(
            grid=grid,
            in_specs=[
                # scalar alpha, whole array resident in SMEM
                pl.BlockSpec(memory_space=pltpu.MemorySpace.SMEM),
                pl.BlockSpec((br, _LANE), lambda i: (i, 0)),   # x1 tile
                pl.BlockSpec((br, _LANE), lambda i: (i, 0)),   # x2 tile
            ],
            out_specs=pl.BlockSpec((br, _LANE), lambda i: (i, 0)),
        ),
        compiler_params=pltpu.CompilerParams(
            dimension_semantics=("parallel",)),
    )(alpha.reshape(1), a[:n_main].reshape(rows, _LANE),
      b[:n_main].reshape(rows, _LANE))

    out_flat = out_main.reshape(-1)
    if n_main != n:
        # <1-tile ragged tail: blend with plain jnp instead of padding the
        # whole tensor and re-slicing (avoids full extra HBM passes).
        tail = _blend_jnp(a[n_main:], b[n_main:], alpha, out_dtype)
        out_flat = jnp.concatenate([out_flat, tail])

    return out_flat.reshape(orig_shape)


# --------------------------------- demo -------------------------------------

if __name__ == "__main__":
    B, C, H, W = 2, 4, 16, 16

    key = jax.random.PRNGKey(0)
    k1, k2 = jax.random.split(key)
    x1 = jax.random.normal(k1, (B, C, H, W), jnp.float32)
    x2 = jax.random.normal(k2, (B, C, H, W), jnp.float32)
    gate_weight = jnp.float32(0.5)      # matches nn.Parameter(torch.tensor(0.5))

    alpha_ref = jax.nn.sigmoid(gate_weight)

    # 1) aligned f32 input through the kernel path
    out = gate_select(x1, x2, gate_weight)
    jax.block_until_ready(out)
    ref = alpha_ref * x1 + (1.0 - alpha_ref) * x2
    assert out.shape == (B, C, H, W) and out.dtype == jnp.float32
    assert bool(jnp.allclose(out, ref, atol=1e-5, rtol=1e-5)), "f32 mismatch"

    # 2) native bf16 I/O (no f32 round-trip through HBM)
    x1b, x2b = x1.astype(jnp.bfloat16), x2.astype(jnp.bfloat16)
    outb = gate_select(x1b, x2b, gate_weight)
    jax.block_until_ready(outb)
    refb = (alpha_ref * x1b.astype(jnp.float32)
            + (1.0 - alpha_ref) * x2b.astype(jnp.float32)).astype(jnp.bfloat16)
    assert outb.dtype == jnp.bfloat16
    assert bool(jnp.allclose(outb.astype(jnp.float32), refb.astype(jnp.float32),
                             atol=2e-2, rtol=2e-2)), "bf16 mismatch"

    # 3) ragged element count: kernel on the aligned prefix + jnp tail
    k3, k4 = jax.random.split(k2)
    y1 = jax.random.normal(k3, (3, 5, 7, 11), jnp.float32)
    y2 = jax.random.normal(k4, (3, 5, 7, 11), jnp.float32)
    outr = gate_select(y1, y2, gate_weight)
    jax.block_until_ready(outr)
    refr = alpha_ref * y1 + (1.0 - alpha_ref) * y2
    assert outr.shape == y1.shape
    assert bool(jnp.allclose(outr, refr, atol=1e-5, rtol=1e-5)), "ragged mismatch"

    print("KERNEL_OK")
</pallas_src>

<mosaic_0001>
module attributes {stable_mosaic.version = 11 : i64} {
  func.func @_gate_select_kernel(%arg0: i32, %arg1: memref<1xf32, #tpu.memory_space<smem>>, %arg2: memref<16x128xf32, #tpu.memory_space<vmem>>, %arg3: memref<16x128xf32, #tpu.memory_space<vmem>>, %arg4: memref<16x128xf32, #tpu.memory_space<vmem>>) attributes {dimension_semantics = [#tpu.dimension_semantics<parallel>], iteration_bounds = array<i64: 1>, scalar_prefetch = 0 : i64, scratch_operands = 0 : i64, tpu.core_type = #tpu.core_type<tc>, window_params = [{transform_indices = @transform_0, window_bounds = array<i64: 1>}, {transform_indices = @transform_1, window_bounds = array<i64: 16, 128>}, {transform_indices = @transform_2, window_bounds = array<i64: 16, 128>}, {transform_indices = @transform_3, window_bounds = array<i64: 16, 128>}]} {
    %c0 = arith.constant 0 : index
    %0 = memref.load %arg1[%c0] : memref<1xf32, #tpu.memory_space<smem>>
    %c0_0 = arith.constant 0 : index
    %c0_1 = arith.constant 0 : index
    %1 = vector.load %arg2[%c0_0, %c0_1] : memref<16x128xf32, #tpu.memory_space<vmem>>, vector<16x128xf32>
    %c0_2 = arith.constant 0 : index
    %c0_3 = arith.constant 0 : index
    %2 = vector.load %arg3[%c0_2, %c0_3] : memref<16x128xf32, #tpu.memory_space<vmem>>, vector<16x128xf32>
    %3 = vector.broadcast %0 : f32 to vector<16x128xf32>
    %4 = arith.mulf %3, %1 : vector<16x128xf32>
    %cst = arith.constant 1.000000e+00 : f32
    %5 = arith.subf %cst, %0 : f32
    %6 = vector.broadcast %5 : f32 to vector<16x128xf32>
    %7 = arith.mulf %6, %2 : vector<16x128xf32>
    %8 = arith.addf %4, %7 : vector<16x128xf32>
    %c0_4 = arith.constant 0 : index
    %c0_5 = arith.constant 0 : index
    %9 = vector.load %arg4[%c0_4, %c0_5] : memref<16x128xf32, #tpu.memory_space<vmem>>, vector<16x128xf32>
    tpu.vector_store %arg4[%c0_4, %c0_5], %8 {strides = array<i32>} : memref<16x128xf32, #tpu.memory_space<vmem>>, vector<16x128xf32>,
    return
  }
  func.func @transform_0(%arg0: i32) -> i32 {
    %c0_i32 = arith.constant 0 : i32
    %c0_i32_0 = arith.constant 0 : i32
    return %c0_i32 : i32
  }
  func.func @transform_1(%arg0: i32) -> (i32, i32) {
    %c0_i32 = arith.constant 0 : i32
    %c0_i32_0 = arith.constant 0 : i32
    return %arg0, %c0_i32 : i32, i32
  }
  func.func @transform_2(%arg0: i32) -> (i32, i32) {
    %c0_i32 = arith.constant 0 : i32
    %c0_i32_0 = arith.constant 0 : i32
    return %arg0, %c0_i32 : i32, i32
  }
  func.func @transform_3(%arg0: i32) -> (i32, i32) {
    %c0_i32 = arith.constant 0 : i32
    %c0_i32_0 = arith.constant 0 : i32
    return %arg0, %c0_i32 : i32, i32
  }
}

</mosaic_0001>

<llo_original>
// kernel: tpu_custom_call.1
$region0: #{tpu_custom_call.1}
  #allocation0 [shape = 'u32[]', space=smem, size = 0x4, offset = 0x4, fixed_abs, tag = 'smem constant byte address 0x4 - core index']
  #allocation1 [shape = 'u32[144,128]{1,0:T(1,128)}', space=vmem, size = 0x12000, scoped, tag = 'internal scratch']
  #allocation2 [shape = 'f32[1]{0:T(128)S(6)}', space=smem, size = 0x200, scoped, tag = 'scoped memory for tpu_custom_call.1']
  %s0 = inlined_call_operand.<no memory space> [shape: f32[1], index: 0, kind: input, shape index: {}]
  %s1 = inlined_call_operand.hbm [shape: f32[16,128], index: 1, kind: input, shape index: {}]
  %s2 = inlined_call_operand.hbm [shape: f32[16,128], index: 2, kind: input, shape index: {}]
  %s3 = inlined_call_operand.hbm [shape: f32[16,128], index: 3, kind: output, shape index: {}]
  %s4 = sld [smem:[#allocation0]]
  $region30: #{tpu_custom_call.1} parent=0
    _
  %s6 = ssub.s32 1, %s4
  %s7 = scalar_select 0, %s6, %s4
  %8 = sst [smem:[#allocation2]] %s0
  $region1: #{tpu_custom_call.1} parent=0
    #allocation3 [shape = 'u8[8192]{0}', space=vmem, size = 0x2000, scoped, tag = 'input window, operand 1, single buffered']
    #allocation4 [shape = 's32[1]{0}', space=sflag, size = 0x4, scoped, tag = 'scoped memory for tpu_custom_call.1']
    #allocation5 [shape = 's32[1]{0}', space=sflag, size = 0x4, scoped, tag = 'scoped memory for tpu_custom_call.1']
    #allocation6 [shape = 'u8[8192]{0}', space=vmem, size = 0x2000, scoped, tag = 'input window, operand 2, single buffered']
    #allocation7 [shape = 's32[1]{0}', space=sflag, size = 0x4, scoped, tag = 'scoped memory for tpu_custom_call.1']
    #allocation8 [shape = 'u8[8192]{0}', space=vmem, size = 0x2000, scoped, tag = 'output window, operand 0, single buffered']
    %9 = vsyncpa [#allocation4], 0
    %10 = vsyncpa [#allocation7], 0
    %11 = vsyncpa [#allocation5], 0
    // Predicated region
    $region2: #{tpu_custom_call.1} parent=1 // pred_check
      _
    $region3: #{tpu_custom_call.1} parent=1 // pred_check_branch
      %13 = sbr.rel (0) target = $region5
    $region4: #{tpu_custom_call.1} parent=1 // pred_region
      _
    $region5: #{tpu_custom_call.1} parent=1 // pred_fallthru
      _
    // Predicated region
    $region6: #{tpu_custom_call.1} parent=1 // pred_check
      _
    $region7: #{tpu_custom_call.1} parent=1 // pred_check_branch
      %15 = sbr.rel (0) target = $region9
    $region8: #{tpu_custom_call.1} parent=1 // pred_region
      %s17 = ssub.s32 256, 256
      %18 = vsyncadd [#allocation4], %s17
      %s19 = sshll.u32 [#allocation3], 4
      %s20 = int_to_ptr.vmem [resolvable:$true] %s19
      %25 = dma.hbm_to_vmem [thread:$0]  %s1, 256, %s20, [#allocation4], 128, 128, 8
    $region9: #{tpu_custom_call.1} parent=1 // pred_fallthru
      _
    // Predicated region
    $region10: #{tpu_custom_call.1} parent=1 // pred_check
      _
    $region11: #{tpu_custom_call.1} parent=1 // pred_check_branch
      %27 = sbr.rel (0) target = $region13
    $region12: #{tpu_custom_call.1} parent=1 // pred_region
      %s29 = ssub.s32 256, 256
      %30 = vsyncadd [#allocation7], %s29
      %s31 = sshll.u32 [#allocation6], 4
      %s32 = int_to_ptr.vmem [resolvable:$true] %s31
      %37 = dma.hbm_to_vmem [thread:$0]  %s2, 256, %s32, [#allocation7], 128, 128, 8
    $region13: #{tpu_custom_call.1} parent=1 // pred_fallthru
      _
    // Predicated region
    $region14: #{tpu_custom_call.1} parent=1 // pred_check
      _
    $region15: #{tpu_custom_call.1} parent=1 // pred_check_branch
      %39 = sbr.rel (0) target = $region17
    $region16: #{tpu_custom_call.1} parent=1 // pred_region
      %40 = dma.done [#allocation4], 256
    $region17: #{tpu_custom_call.1} parent=1 // pred_fallthru
      _
    // Predicated region
    $region18: #{tpu_custom_call.1} parent=1 // pred_check
      _
    $region19: #{tpu_custom_call.1} parent=1 // pred_check_branch
      %42 = sbr.rel (0) target = $region21
    $region20: #{tpu_custom_call.1} parent=1 // pred_region
      %43 = dma.done [#allocation7], 256
    $region21: #{tpu_custom_call.1} parent=1 // pred_fallthru
      _
    %s44 = sld [smem:[#allocation2]]
    %v45 = vld [vmem:[#allocation3] sm:$0xff]
    %v46 = vld [vmem:[#allocation3 + $0x8] sm:$0xff]
    %v47 = vld [vmem:[#allocation6] sm:$0xff]
    %v48 = vld [vmem:[#allocation6 + $0x8] sm:$0xff]
    %v49 = vstv %s44
    %v50 = vmul.f32 %v49, %v45
    %v51 = vmul.f32 %v49, %v46
    %s52 = ssub.f32 1.0, %s44
    %v53 = vstv %s52
    %v54 = vmul.f32 %v53, %v47
    %v55 = vmul.f32 %v53, %v48
    %v56 = vadd.f32 %v50, %v54
    %v57 = vadd.f32 %v51, %v55
    %58 = vst [vmem:[#allocation8] sm:$0xff] %v56
    %59 = vst [vmem:[#allocation8 + $0x8] sm:$0xff] %v57
    // Predicated region
    $region22: #{tpu_custom_call.1} parent=1 // pred_check
      _
    $region23: #{tpu_custom_call.1} parent=1 // pred_check_branch
      %61 = sbr.rel (0) target = $region25
    $region24: #{tpu_custom_call.1} parent=1 // pred_region
      %s63 = ssub.s32 256, 256
      %64 = vsyncadd [#allocation5], %s63
      %s65 = sshll.u32 [#allocation8], 4
      %s66 = int_to_ptr.vmem [resolvable:$true] %s65
      %71 = dma.vmem_to_hbm [thread:$0]  %s66, 256, %s3, [#allocation5], 128, 128, 8
    $region25: #{tpu_custom_call.1} parent=1 // pred_fallthru
      _
    // Predicated region
    $region26: #{tpu_custom_call.1} parent=1 // pred_check
      _
    $region27: #{tpu_custom_call.1} parent=1 // pred_check_branch
      %73 = sbr.rel (0) target = $region29
    $region28: #{tpu_custom_call.1} parent=1 // pred_region
      %74 = dma.done [#allocation5], 256
    $region29: #{tpu_custom_call.1} parent=1 // pred_fallthru
      _
    %75 = vsyncpa [#allocation4], 1
    %76 = vsyncpa [#allocation7], 1
    %77 = vsyncpa [#allocation5], 1

</llo_original>
